<compile_context>
chip_gen: v5e
topology: v5e:2x2
jax: 0.10.0
libtpu: 0.0.40
codegen_flags: <defaults>
</compile_context>

<pallas_src>
import jax
import jax.numpy as jnp
from jax import lax
from jax.experimental import pallas as pl
from jax.experimental.pallas import tpu as pltpu


def _convt_hardsigmoid_kernel(p_ref, w_ref, b_ref, o_ref):
    # One lane-dense tile: (TM, 384) @ (384, 128) on the MXU with f32 accumulation,
    # bias + hardsigmoid epilogue fused into the unmasked store.
    acc = jnp.dot(p_ref[...], w_ref[...], preferred_element_type=jnp.float32)
    v = jnp.clip(acc + b_ref[...] + 3.0, 0.0, 6.0) * (1.0 / 6.0)
    o_ref[...] = v.astype(o_ref.dtype)


def _round_up(x, m):
    return (x + m - 1) // m * m


def conv_transpose_hardsigmoid(x, w, b, *, max_tile_m=2048):
    """x: (1, Cin, H, W) NCHW (PyTorch layout), w: (Cin, Cout, K, K), b: (Cout,)."""
    N, Cin, H, W = x.shape
    Cin_w, Cout, K, K2 = w.shape
    assert N == 1 and Cin_w == Cin and K == K2 == 5
    s, p, op = 2, 2, 2

    Hout = (H - 1) * s - 2 * p + K + op     # = 2H + 1
    Wout = (W - 1) * s - 2 * p + K + op     # = 2W + 1

    # ---- polyphase decomposition ------------------------------------------------
    # y[2my+ry, 2mx+rx, co] = sum_{ty,tx,ci} x[my+1-ty, mx+1-tx, ci] * w[ci,co,2ty+ry,2tx+rx]
    # (x zero outside [0,H)x[0,W)); ry/rx = output parity, ty/tx index the surviving taps.
    n_taps = {0: (K + 1) // 2, 1: K // 2}       # {even parity: 3, odd parity: 2}
    My = {0: H + 1, 1: H}                       # per-parity output rows (Hout = 2H+1)
    Mx = {0: W + 1, 1: W}
    phases = [(0, 0), (0, 1), (1, 0), (1, 1)]

    Kc_max = n_taps[0] * n_taps[0] * Cin        # 9*33 = 297
    Kc_pad = _round_up(Kc_max, 128)             # 384 = 3*128: dense lane tiles
    Cout_pad = _round_up(Cout, 128)             # 128: lane-dense (unmasked) stores

    rows_max = My[0] * Mx[0]                    # largest phase ((H+1)*(W+1))
    n_row_tiles = pl.cdiv(rows_max, max_tile_m)
    tile_m = _round_up(pl.cdiv(rows_max, n_row_tiles), 8)
    rows_pad = tile_m * n_row_tiles

    # ---- glue (plain JAX): bf16 first, then per-phase im2col straight from x ----
    xl = jnp.transpose(x[0], (1, 2, 0)).astype(jnp.bfloat16)       # (H, W, Cin) bf16
    # iy = my + 1 - ty spans [-1, H+1]  ->  pad (1 before, 2 after) each spatial dim.
    xpad = jnp.pad(xl, ((1, 2), (1, 2), (0, 0)))                   # (H+3, W+3, Cin)

    p_slabs, w_slabs = [], []
    for (ry, rx) in phases:
        ty_n, tx_n = n_taps[ry], n_taps[rx]
        my, mx = My[ry], Mx[rx]
        kc = ty_n * tx_n * Cin
        cols = [
            xpad[2 - ty: 2 - ty + my, 2 - tx: 2 - tx + mx, :].reshape(my * mx, Cin)
            for ty in range(ty_n) for tx in range(tx_n)
        ]
        pp = jnp.concatenate(cols, axis=1)                          # (my*mx, kc) bf16
        pp = jnp.pad(pp, ((0, rows_pad - my * mx), (0, Kc_pad - kc)))
        p_slabs.append(pp)

        wp = jnp.transpose(w[:, :, ry::2, rx::2], (2, 3, 0, 1))     # (ty_n, tx_n, Cin, Cout)
        wp = wp.reshape(kc, Cout)                                   # tap-major rows
        wp = jnp.pad(wp, ((0, Kc_pad - kc), (0, Cout_pad - Cout)))
        w_slabs.append(wp.astype(jnp.bfloat16))

    patches = jnp.stack(p_slabs)                                    # (4, rows_pad, 384) bf16
    weights = jnp.stack(w_slabs)                                    # (4, 384, 128)    bf16
    bias = jnp.pad(b.astype(jnp.float32), (0, Cout_pad - Cout)).reshape(1, Cout_pad)

    # ---- hot path: one lane-dense matmul kernel, grid = (phase, row tiles) -------
    # Both axes are independent -> fully "parallel"; total steps are a multiple of 4,
    # so v7x's two TensorCores always split evenly.  Bias block index is constant, so
    # the pipeline only DMAs it once; the weight slab re-fetches only on phase change.
    out = pl.pallas_call(
        _convt_hardsigmoid_kernel,
        out_shape=jax.ShapeDtypeStruct((4, rows_pad, Cout_pad), jnp.float32),
        grid_spec=pltpu.PrefetchScalarGridSpec(
            num_scalar_prefetch=0,
            grid=(4, n_row_tiles),
            in_specs=[
                pl.BlockSpec((None, tile_m, Kc_pad), lambda ph, i: (ph, i, 0)),
                pl.BlockSpec((None, Kc_pad, Cout_pad), lambda ph, i: (ph, 0, 0)),
                pl.BlockSpec((1, Cout_pad), lambda ph, i: (0, 0)),
            ],
            out_specs=pl.BlockSpec((None, tile_m, Cout_pad), lambda ph, i: (ph, i, 0)),
        ),
        compiler_params=pltpu.CompilerParams(
            dimension_semantics=("parallel", "parallel")),
    )(patches, weights, bias)

    # ---- re-interleave the 4 phases into (Hout, Wout, Cout), then to NCHW --------
    y = jnp.zeros((Hout, Wout, Cout), jnp.float32)
    for k, (ry, rx) in enumerate(phases):
        my, mx = My[ry], Mx[rx]
        blk = out[k, :my * mx, :Cout].reshape(my, mx, Cout)
        y = y.at[ry::2, rx::2, :].set(blk)
    return jnp.transpose(y, (2, 0, 1))[None].astype(x.dtype)


if __name__ == "__main__":
    key = jax.random.PRNGKey(0)
    kx, kw, kb = jax.random.split(key, 3)

    Cin, Cout, K = 33, 41, 5
    H = W = 16                                   # small spatial size (module uses 41x41)

    x = jax.random.normal(kx, (1, Cin, H, W), jnp.float32)
    # deterministic "PyTorch-like" init: uniform(-1/sqrt(fan), 1/sqrt(fan))
    fan = Cout * K * K
    bound = 1.0 / jnp.sqrt(jnp.float32(fan))
    w = jax.random.uniform(kw, (Cin, Cout, K, K), jnp.float32, -bound, bound)
    b = jax.random.uniform(kb, (Cout,), jnp.float32, -bound, bound)

    y = conv_transpose_hardsigmoid(x, w, b)
    y = jax.block_until_ready(y)

    # independent reference: XLA dilated conv on the same bf16-rounded inputs
    # (kernel multiplies bf16 on the MXU, accumulates f32), f32 accumulation (HIGHEST).
    s, p, op = 2, 2, 2
    pb, pa = K - 1 - p, K - 1 - p + op
    xq = x.astype(jnp.bfloat16).astype(jnp.float32)
    wq = w.astype(jnp.bfloat16).astype(jnp.float32)
    w_ref = jnp.transpose(jnp.flip(wq, (2, 3)), (1, 0, 2, 3))   # (Cout, Cin, K, K)
    ref = lax.conv_general_dilated(
        xq, w_ref, window_strides=(1, 1),
        padding=((pb, pa), (pb, pa)), lhs_dilation=(s, s),
        dimension_numbers=("NCHW", "OIHW", "NCHW"),
        precision=lax.Precision.HIGHEST)
    ref = jnp.clip(ref + b[None, :, None, None] + 3.0, 0.0, 6.0) / 6.0

    Hout = (H - 1) * s - 2 * p + K + op
    assert y.shape == (1, Cout, Hout, Hout), y.shape
    assert jnp.allclose(y, ref, atol=1e-4, rtol=1e-4), float(jnp.max(jnp.abs(y - ref)))

    print("KERNEL_OK")
</pallas_src>

<mosaic_0001>
module attributes {stable_mosaic.version = 11 : i64} {
  func.func @_convt_hardsigmoid_kernel(%arg0: i32, %arg1: i32, %arg2: memref<1x296x384xbf16, #tpu.memory_space<vmem>>, %arg3: memref<1x384x128xbf16, #tpu.memory_space<vmem>>, %arg4: memref<1x128xf32, #tpu.memory_space<vmem>>, %arg5: memref<1x296x128xf32, #tpu.memory_space<vmem>>) attributes {dimension_semantics = [#tpu.dimension_semantics<parallel>, #tpu.dimension_semantics<parallel>], iteration_bounds = array<i64: 4, 1>, scalar_prefetch = 0 : i64, scratch_operands = 0 : i64, tpu.core_type = #tpu.core_type<tc>, window_params = [{transform_indices = @transform_0, window_bounds = array<i64: 1, 296, 384>}, {transform_indices = @transform_1, window_bounds = array<i64: 1, 384, 128>}, {pipeline_mode = #tpu.pipeline_mode<synchronous>, transform_indices = @transform_2, window_bounds = array<i64: 1, 128>}, {transform_indices = @transform_3, window_bounds = array<i64: 1, 296, 128>}]} {
    %c0 = arith.constant 0 : index
    %c0_0 = arith.constant 0 : index
    %c0_1 = arith.constant 0 : index
    %0 = vector.load %arg2[%c0, %c0_0, %c0_1] : memref<1x296x384xbf16, #tpu.memory_space<vmem>>, vector<1x296x384xbf16>
    %1 = vector.shape_cast %0 : vector<1x296x384xbf16> to vector<296x384xbf16>
    %c0_2 = arith.constant 0 : index
    %c0_3 = arith.constant 0 : index
    %c0_4 = arith.constant 0 : index
    %2 = vector.load %arg3[%c0_2, %c0_3, %c0_4] : memref<1x384x128xbf16, #tpu.memory_space<vmem>>, vector<1x384x128xbf16>
    %3 = vector.shape_cast %2 : vector<1x384x128xbf16> to vector<384x128xbf16>
    %cst = arith.constant dense<0.000000e+00> : vector<296x128xf32>
    %4 = tpu.matmul %1, %3, %cst {dimension_numbers = #tpu.dot_dimension_numbers<[1], [0], [0], [1], [0, 0, 1, 1], [], []>} : vector<296x384xbf16>, vector<384x128xbf16>, vector<296x128xf32> -> vector<296x128xf32>
    %c0_5 = arith.constant 0 : index
    %c0_6 = arith.constant 0 : index
    %5 = vector.load %arg4[%c0_5, %c0_6] : memref<1x128xf32, #tpu.memory_space<vmem>>, vector<1x128xf32>
    %6 = vector.broadcast %5 : vector<1x128xf32> to vector<296x128xf32>
    %7 = arith.addf %4, %6 : vector<296x128xf32>
    %cst_7 = arith.constant 3.000000e+00 : f32
    %8 = vector.broadcast %cst_7 : f32 to vector<296x128xf32>
    %9 = arith.addf %7, %8 : vector<296x128xf32>
    %cst_8 = arith.constant 0.000000e+00 : f32
    %cst_9 = arith.constant 6.000000e+00 : f32
    %10 = vector.broadcast %cst_8 : f32 to vector<296x128xf32>
    %11 = arith.maximumf %10, %9 : vector<296x128xf32>
    %12 = vector.broadcast %cst_9 : f32 to vector<296x128xf32>
    %13 = arith.minimumf %12, %11 : vector<296x128xf32>
    %cst_10 = arith.constant 0.166666672 : f32
    %14 = vector.broadcast %cst_10 : f32 to vector<296x128xf32>
    %15 = arith.mulf %13, %14 : vector<296x128xf32>
    %c0_11 = arith.constant 0 : index
    %c0_12 = arith.constant 0 : index
    %c0_13 = arith.constant 0 : index
    %16 = vector.load %arg5[%c0_11, %c0_12, %c0_13] : memref<1x296x128xf32, #tpu.memory_space<vmem>>, vector<1x296x128xf32>
    %17 = vector.shape_cast %16 : vector<1x296x128xf32> to vector<296x128xf32>
    %18 = vector.shape_cast %15 : vector<296x128xf32> to vector<1x296x128xf32>
    tpu.vector_store %arg5[%c0_11, %c0_12, %c0_13], %18 {strides = array<i32>} : memref<1x296x128xf32, #tpu.memory_space<vmem>>, vector<1x296x128xf32>,
    return
  }
  func.func @transform_0(%arg0: i32, %arg1: i32) -> (i32, i32, i32) {
    %c0_i32 = arith.constant 0 : i32
    %c0_i32_0 = arith.constant 0 : i32
    return %arg0, %arg1, %c0_i32 : i32, i32, i32
  }
  func.func @transform_1(%arg0: i32, %arg1: i32) -> (i32, i32, i32) {
    %c0_i32 = arith.constant 0 : i32
    %c0_i32_0 = arith.constant 0 : i32
    %c0_i32_1 = arith.constant 0 : i32
    return %arg0, %c0_i32, %c0_i32_0 : i32, i32, i32
  }
  func.func @transform_2(%arg0: i32, %arg1: i32) -> (i32, i32) {
    %c0_i32 = arith.constant 0 : i32
    %c0_i32_0 = arith.constant 0 : i32
    %c0_i32_1 = arith.constant 0 : i32
    return %c0_i32, %c0_i32_0 : i32, i32
  }
  func.func @transform_3(%arg0: i32, %arg1: i32) -> (i32, i32, i32) {
    %c0_i32 = arith.constant 0 : i32
    %c0_i32_0 = arith.constant 0 : i32
    return %arg0, %arg1, %c0_i32 : i32, i32, i32
  }
}

</mosaic_0001>

<llo_original>
// kernel: tpu_custom_call.1
$region0: #{tpu_custom_call.1}
  #allocation0 [shape = 'u32[]', space=smem, size = 0x4, offset = 0x4, fixed_abs, tag = 'smem constant byte address 0x4 - core index']
  #allocation1 [shape = 'u32[72,128]{1,0:T(1,128)}', space=vmem, size = 0x9000, scoped, tag = 'internal scratch']
  %s0 = inlined_call_operand.hbm [shape: bf16[4,296,384], index: 0, kind: input, shape index: {}]
  %s1 = inlined_call_operand.hbm [shape: bf16[4,384,128], index: 1, kind: input, shape index: {}]
  %s2 = inlined_call_operand.vmem [shape: f32[1,128], index: 2, kind: input, shape index: {}]
  %s3 = inlined_call_operand.hbm [shape: f32[4,296,128], index: 3, kind: output, shape index: {}]
  %s4 = sld [smem:[#allocation0]]
  $region53: #{tpu_custom_call.1} parent=0
    _
  %s6 = ssub.s32 1, %s4
  %s7 = scalar_select 0, %s6, %s4
  $region1: #{tpu_custom_call.1} parent=0
    #allocation2 [shape = 'u8[454656]{0}', space=vmem, size = 0x6f000, scoped, tag = 'input window, operand 0']
    #allocation3 [shape = 's32[2]{0}', space=sflag, size = 0x8, scoped, tag = 'scoped memory for tpu_custom_call.1']
    #allocation4 [shape = 's32[2]{0}', space=sflag, size = 0x8, scoped, tag = 'scoped memory for tpu_custom_call.1']
    #allocation5 [shape = 'u8[196608]{0}', space=vmem, size = 0x30000, scoped, tag = 'input window, operand 1']
    #allocation6 [shape = 's32[2]{0}', space=sflag, size = 0x8, scoped, tag = 'scoped memory for tpu_custom_call.1']
    #allocation7 [shape = 'u8[303104]{0}', space=vmem, size = 0x4a000, scoped, tag = 'output window, operand 0']
    %8 = vsyncpa [#allocation3], 0
    %s9 = scalar_lea.sflag [#allocation3], 1
    %10 = vsyncpa %s9, 0
    %11 = vsyncpa [#allocation6], 0
    %s12 = scalar_lea.sflag [#allocation6], 1
    %13 = vsyncpa %s12, 0
    %14 = vsyncpa [#allocation4], 0
    %s15 = scalar_lea.sflag [#allocation4], 1
    %16 = vsyncpa %s15, 0
    loop: start=0, step=1, limit=6
    $region2: #{tpu_custom_call.1} parent=1 // loop_pre_header
      _
    $region3: #{tpu_custom_call.1} parent=1 // loop_header
      %s18 = sphi 0, %s22
      %p19 = scmp.ge.s32.totalorder %s18, 6
      %s25 = sphi 0, %s37
      %s26 = sphi 0, %s33
      %s27 = sphi 0, %s25
      %s28 = sphi 0, %s26
      %s29 = sphi 0, %s27
      %s30 = sphi 0, %s28
      %s42 = sphi 0, %s44
      %s45 = sphi 0, %s42
      %s46 = sphi 0, %s45
      %s62 = sphi 0, %s46
      %s68 = sphi 0, %s70
      %s71 = sphi 0, %s68
      %s72 = sphi 0, %s71
      %s88 = sphi 0, %s72
      %s92 = sphi 0, %s92
      %s94 = sphi 0, %s92
      %s95 = sphi 0, %s94
      %s109 = sphi 0, %s95
      %s117 = sphi 0, %s119
      %s120 = sphi 0, %s117
      %s121 = sphi 0, %s120
      %s137 = sphi 0, %s121
    $region4: #{tpu_custom_call.1} parent=1 // loop_header_branch
      %21 = sbr.rel (%p19) target = $region8
    $region5: #{tpu_custom_call.1} parent=1 // loop_body
      %s23 = ssub.s32 %s18, 1
      %s24 = ssub.s32 %s18, 2
      %s31 = sadd.s32 1, %s26
      %p32 = scmp.ge.s32.totalorder %s31, 1
      %s33 = scalar_select %p32, 0, %s31
      %s34 = sadd.s32 1, %s25
      %s35 = scalar_select %p32, %s34, %s25
      %p36 = scmp.ge.s32.totalorder %s35, 4
      %s37 = scalar_select %p36, 0, %s35
      %s38 = ssub.s32 %s25, %s37
      %s39 = ssub.s32 %s26, %s33
      %s40 = sor.u32 %s38, %s39
      %p41 = scmp.eq.s32.totalorder %s40, 0
      %s43 = sadd.s32 %s42, 1
      %s44 = scalar_select %p41, %s42, %s43
      %p47 = pneg %p41
      %p48 = scmp.eq.s32.totalorder %s18, 3
      %p49 = por %p47, %p48
      %p50 = scmp.ne.s32.totalorder %s42, %s45
      %p51 = scmp.eq.s32.totalorder %s18, 0
      %p52 = por %p50, %p51
      %p53 = scmp.ne.s32.totalorder %s42, %s45
      %p54 = scmp.eq.s32.totalorder %s23, 3
      %p55 = por %p53, %p54
      %p56 = scmp.ne.s32.totalorder %s45, %s46
      %p57 = scmp.eq.s32.totalorder %s23, 0
      %p58 = por %p56, %p57
      %p59 = scmp.ne.s32.totalorder %s45, %s46
      %p60 = scmp.eq.s32.totalorder %s24, 3
      %p61 = por %p59, %p60
      %p63 = scmp.ne.s32.totalorder %s46, %s62
      %p64 = scmp.eq.s32.totalorder %s24, 0
      %p65 = por %p63, %p64
      %s66 = ssub.s32 %s25, %s37
      %p67 = scmp.eq.s32.totalorder %s66, 0
      %s69 = sadd.s32 %s68, 1
      %s70 = scalar_select %p67, %s68, %s69
      %p73 = pneg %p67
      %p74 = scmp.eq.s32.totalorder %s18, 3
      %p75 = por %p73, %p74
      %p76 = scmp.ne.s32.totalorder %s68, %s71
      %p77 = scmp.eq.s32.totalorder %s18, 0
      %p78 = por %p76, %p77
      %p79 = scmp.ne.s32.totalorder %s68, %s71
      %p80 = scmp.eq.s32.totalorder %s23, 3
      %p81 = por %p79, %p80
      %p82 = scmp.ne.s32.totalorder %s71, %s72
      %p83 = scmp.eq.s32.totalorder %s23, 0
      %p84 = por %p82, %p83
      %p85 = scmp.ne.s32.totalorder %s71, %s72
      %p86 = scmp.eq.s32.totalorder %s24, 3
      %p87 = por %p85, %p86
      %p89 = scmp.ne.s32.totalorder %s72, %s88
      %p90 = scmp.eq.s32.totalorder %s24, 0
      %p91 = por %p89, %p90
      %s93 = sadd.s32 %s92, 1
      %p96 = scmp.eq.s32.totalorder %s18, 3
      %p97 = scmp.ne.s32.totalorder %s92, %s94
      %p98 = scmp.eq.s32.totalorder %s18, 0
      %p99 = por %p97, %p98
      %p100 = scmp.ne.s32.totalorder %s92, %s94
      %p101 = scmp.eq.s32.totalorder %s23, 3
      %p102 = por %p100, %p101
      %p103 = scmp.ne.s32.totalorder %s94, %s95
      %p104 = scmp.eq.s32.totalorder %s23, 0
      %p105 = por %p103, %p104
      %p106 = scmp.ne.s32.totalorder %s94, %s95
      %p107 = scmp.eq.s32.totalorder %s24, 3
      %p108 = por %p106, %p107
      %p110 = scmp.ne.s32.totalorder %s95, %s109
      %p111 = scmp.eq.s32.totalorder %s24, 0
      %p112 = por %p110, %p111
      %s113 = ssub.s32 %s25, %s37
      %s114 = ssub.s32 %s26, %s33
      %s115 = sor.u32 %s113, %s114
      %p116 = scmp.eq.s32.totalorder %s115, 0
      %s118 = sadd.s32 %s117, 1
      %s119 = scalar_select %p116, %s117, %s118
      %p122 = pneg %p116
      %p123 = scmp.eq.s32.totalorder %s18, 3
      %p124 = por %p122, %p123
      %p125 = scmp.ne.s32.totalorder %s117, %s120
      %p126 = scmp.eq.s32.totalorder %s18, 0
      %p127 = por %p125, %p126
      %p128 = scmp.ne.s32.totalorder %s117, %s120
      %p129 = scmp.eq.s32.totalorder %s23, 3
      %p130 = por %p128, %p129
      %p131 = scmp.ne.s32.totalorder %s120, %s121
      %p132 = scmp.eq.s32.totalorder %s23, 0
      %p133 = por %p131, %p132
      %p134 = scmp.ne.s32.totalorder %s120, %s121
      %p135 = scmp.eq.s32.totalorder %s24, 3
      %p136 = por %p134, %p135
      %p138 = scmp.ne.s32.totalorder %s121, %s137
      %p139 = scmp.eq.s32.totalorder %s24, 0
      %p140 = por %p138, %p139
      %p141 = scmp.le.s32.totalorder 1, %s18
      %p142 = scmp.lt.s32.totalorder %s18, 5
      %p143 = pnand %p141, %p142
      %p144 = pneg %p143
      // Predicated region
      $region9: #{tpu_custom_call.1} parent=5 // pred_check
        _
      $region10: #{tpu_custom_call.1} parent=5 // pred_check_branch
        %146 = sbr.rel (%p143) target = $region12
      $region11: #{tpu_custom_call.1} parent=5 // pred_region
        %s147 = ssub.s32 %s18, 1
        // Predicated region
        $region13: #{tpu_custom_call.1} parent=11 // pred_check
          %p148 = pneg %p105
        $region14: #{tpu_custom_call.1} parent=11 // pred_check_branch
          %150 = sbr.rel (%p148) target = $region16
        $region15: #{tpu_custom_call.1} parent=11 // pred_region
          _
        $region16: #{tpu_custom_call.1} parent=11 // pred_fallthru
          _
      $region12: #{tpu_custom_call.1} parent=5 // pred_fallthru
        _
      %p151 = scmp.lt.s32.totalorder %s18, 4
      // Predicated region
      $region17: #{tpu_custom_call.1} parent=5 // pred_check
        %p152 = pneg %p151
      $region18: #{tpu_custom_call.1} parent=5 // pred_check_branch
        %154 = sbr.rel (%p152) target = $region20
      $region19: #{tpu_custom_call.1} parent=5 // pred_region
        // Predicated region
        $region21: #{tpu_custom_call.1} parent=19 // pred_check
          %p155 = pneg %p52
        $region22: #{tpu_custom_call.1} parent=19 // pred_check_branch
          %157 = sbr.rel (%p155) target = $region24
        $region23: #{tpu_custom_call.1} parent=19 // pred_region
          %s158 = sand.u32 %s42, 1
          %s159 = scalar_lea.sflag [#allocation3], %s158
          %s160 = sand.u32 %s42, 1
          %s161 = smul.addr %s160, 444
          %s162 = scalar_lea.vmem [#allocation2], %s161
          %s163 = smul.u32 37, %s26
          %165 = vsyncadd %s159, 0
          %s166 = smul.addr %s163, 3
          %s167 = smul.addr %s25, 111
          %s168 = sadd.s32 %s166, %s167
          %s169 = smul.addr %s168, 4
          %s170 = scalar_lea.hbm %s0, %s169
          %s171 = sshll.u32 %s170, 4
          %s172 = int_to_ptr.hbm [resolvable:$true] %s171
          %s173 = sshll.u32 %s162, 4
          %s174 = int_to_ptr.vmem [resolvable:$true] %s173
          %179 = dma.hbm_to_vmem [thread:$0]  %s172, 7104, %s174, %s159, 192, 192, 12
        $region24: #{tpu_custom_call.1} parent=19 // pred_fallthru
          _
        // Predicated region
        $region25: #{tpu_custom_call.1} parent=19 // pred_check
          %p180 = pneg %p78
        $region26: #{tpu_custom_call.1} parent=19 // pred_check_branch
          %182 = sbr.rel (%p180) target = $region28
        $region27: #{tpu_custom_call.1} parent=19 // pred_region
          %s183 = sand.u32 %s68, 1
          %s184 = scalar_lea.sflag [#allocation6], %s183
          %s185 = sand.u32 %s68, 1
          %s186 = smul.addr %s185, 192
          %s187 = scalar_lea.vmem [#allocation5], %s186
          %189 = vsyncadd %s184, 0
          %s190 = smul.addr %s25, 48
          %s191 = smul.addr %s190, 4
          %s192 = scalar_lea.hbm %s1, %s191
          %s193 = sshll.u32 %s192, 4
          %s194 = int_to_ptr.hbm [resolvable:$true] %s193
          %s195 = sshll.u32 %s187, 4
          %s196 = int_to_ptr.vmem [resolvable:$true] %s195
          %201 = dma.hbm_to_vmem [thread:$0]  %s194, 3072, %s196, %s184, 64, 64, 4
        $region28: #{tpu_custom_call.1} parent=19 // pred_fallthru
          _
      $region20: #{tpu_custom_call.1} parent=5 // pred_fallthru
        _
      %p202 = scmp.le.s32.totalorder 1, %s18
      %p203 = scmp.lt.s32.totalorder %s18, 5
      %p204 = pnand %p202, %p203
      %p205 = pneg %p204
      // Predicated region
      $region29: #{tpu_custom_call.1} parent=5 // pred_check
        _
      $region30: #{tpu_custom_call.1} parent=5 // pred_check_branch
        %207 = sbr.rel (%p204) target = $region32
      $region31: #{tpu_custom_call.1} parent=5 // pred_region
        %s208 = ssub.s32 %s18, 1
        %s209 = sand.u32 %s45, 1
        %s210 = scalar_lea.sflag [#allocation3], %s209
        %s211 = sand.u32 %s45, 1
        %s212 = smul.addr %s211, 444
        %s213 = scalar_lea.vmem [#allocation2], %s212
        // Predicated region
        $region33: #{tpu_custom_call.1} parent=31 // pred_check
          %p214 = pneg %p58
        $region34: #{tpu_custom_call.1} parent=31 // pred_check_branch
          %216 = sbr.rel (%p214) target = $region36
        $region35: #{tpu_custom_call.1} parent=31 // pred_region
          %218 = dma.done %s210, 7104
        $region36: #{tpu_custom_call.1} parent=31 // pred_fallthru
          _
        %s219 = sand.u32 %s71, 1
        %s220 = scalar_lea.sflag [#allocation6], %s219
        %s221 = sand.u32 %s71, 1
        %s222 = smul.addr %s221, 192
        %s223 = scalar_lea.vmem [#allocation5], %s222
        // Predicated region
        $region37: #{tpu_custom_call.1} parent=31 // pred_check
          %p224 = pneg %p84
        $region38: #{tpu_custom_call.1} parent=31 // pred_check_branch
          %226 = sbr.rel (%p224) target = $region40
        $region39: #{tpu_custom_call.1} parent=31 // pred_region
          %228 = dma.done %s220, 3072
        $region40: #{tpu_custom_call.1} parent=31 // pred_fallthru
          _
        %s229 = sand.u32 %s45, 1
        %s230 = scalar_lea.sflag [#allocation3], %s229
        %s231 = sand.u32 %s45, 1
        %s232 = smul.addr %s231, 444
        %s233 = scalar_lea.vmem [#allocation2], %s232
        %p234 = pneg %p58
        %p235 = pneg %p55
        %s236 = sand.u32 %s71, 1
        %s237 = scalar_lea.sflag [#allocation6], %s236
        %s238 = sand.u32 %s71, 1
        %s239 = smul.addr %s238, 192
        %s240 = scalar_lea.vmem [#allocation5], %s239
        %p241 = pneg %p84
        %p242 = pneg %p81
        %p243 = pneg %p105
        %p244 = pneg %p102
        %p245 = pneg %p133
        %p246 = pneg %p130
        %s247 = sand.u32 %s120, 1
        %s248 = scalar_lea.sflag [#allocation4], %s247
        %s249 = sand.u32 %s120, 1
        %s250 = smul.addr %s249, 296
        %s251 = scalar_lea.vmem [#allocation7], %s250
        %s252 = smul.u32 37, %s28
        %s253 = smul.u32 37, %s28
        %v254 = vld [vmem:[%s213] sm:$0xff]
        %v255 = vld [vmem:[%s213 + $0x8] sm:$0xf]
        %v256 = vld [vmem:[%s213 + $0xc] sm:$0xff]
        %v257 = vld [vmem:[%s213 + $0x14] sm:$0xf]
        %v258 = vld [vmem:[%s213 + $0x18] sm:$0xff]
        %v259 = vld [vmem:[%s213 + $0x20] sm:$0xf]
        %v260 = vld [vmem:[%s213 + $0x24] sm:$0xff]
        %v261 = vld [vmem:[%s213 + $0x2c] sm:$0xf]
        %v262 = vld [vmem:[%s213 + $0x30] sm:$0xff]
        %v263 = vld [vmem:[%s213 + $0x38] sm:$0xf]
        %v264 = vld [vmem:[%s213 + $0x3c] sm:$0xff]
        %v265 = vld [vmem:[%s213 + $0x44] sm:$0xf]
        %v266 = vld [vmem:[%s213 + $0x48] sm:$0xff]
        %v267 = vld [vmem:[%s213 + $0x50] sm:$0xf]
        %v268 = vld [vmem:[%s213 + $0x54] sm:$0xff]
        %v269 = vld [vmem:[%s213 + $0x5c] sm:$0xf]
        %v270 = vld [vmem:[%s213 + $0x60] sm:$0xff]
        %v271 = vld [vmem:[%s213 + $0x68] sm:$0xf]
        %v272 = vld [vmem:[%s213 + $0x6c] sm:$0xff]
        %v273 = vld [vmem:[%s213 + $0x74] sm:$0xf]
        %v274 = vld [vmem:[%s213 + $0x78] sm:$0xff]
        %v275 = vld [vmem:[%s213 + $0x80] sm:$0xf]
        %v276 = vld [vmem:[%s213 + $0x84] sm:$0xff]
        %v277 = vld [vmem:[%s213 + $0x8c] sm:$0xf]
        %v278 = vld [vmem:[%s213 + $0x90] sm:$0xff]
        %v279 = vld [vmem:[%s213 + $0x98] sm:$0xf]
        %v280 = vld [vmem:[%s213 + $0x9c] sm:$0xff]
        %v281 = vld [vmem:[%s213 + $0xa4] sm:$0xf]
        %v282 = vld [vmem:[%s213 + $0xa8] sm:$0xff]
        %v283 = vld [vmem:[%s213 + $0xb0] sm:$0xf]
        %v284 = vld [vmem:[%s213 + $0xb4] sm:$0xff]
        %v285 = vld [vmem:[%s213 + $0xbc] sm:$0xf]
        %v286 = vld [vmem:[%s213 + $0xc0] sm:$0xff]
        %v287 = vld [vmem:[%s213 + $0xc8] sm:$0xf]
        %v288 = vld [vmem:[%s213 + $0xcc] sm:$0xff]
        %v289 = vld [vmem:[%s213 + $0xd4] sm:$0xf]
        %v290 = vld [vmem:[%s213 + $0xd8] sm:$0xff]
        %v291 = vld [vmem:[%s213 + $0xe0] sm:$0xf]
        %v292 = vld [vmem:[%s213 + $0xe4] sm:$0xff]
        %v293 = vld [vmem:[%s213 + $0xec] sm:$0xf]
        %v294 = vld [vmem:[%s213 + $0xf0] sm:$0xff]
        %v295 = vld [vmem:[%s213 + $0xf8] sm:$0xf]
        %v296 = vld [vmem:[%s213 + $0xfc] sm:$0xff]
        %v297 = vld [vmem:[%s213 + $0x104] sm:$0xf]
        %v298 = vld [vmem:[%s213 + $0x108] sm:$0xff]
        %v299 = vld [vmem:[%s213 + $0x110] sm:$0xf]
        %v300 = vld [vmem:[%s213 + $0x114] sm:$0xff]
        %v301 = vld [vmem:[%s213 + $0x11c] sm:$0xf]
        %v302 = vld [vmem:[%s213 + $0x120] sm:$0xff]
        %v303 = vld [vmem:[%s213 + $0x128] sm:$0xf]
        %v304 = vld [vmem:[%s213 + $0x12c] sm:$0xff]
        %v305 = vld [vmem:[%s213 + $0x134] sm:$0xf]
        %v306 = vld [vmem:[%s213 + $0x138] sm:$0xff]
        %v307 = vld [vmem:[%s213 + $0x140] sm:$0xf]
        %v308 = vld [vmem:[%s213 + $0x144] sm:$0xff]
        %v309 = vld [vmem:[%s213 + $0x14c] sm:$0xf]
        %v310 = vld [vmem:[%s213 + $0x150] sm:$0xff]
        %v311 = vld [vmem:[%s213 + $0x158] sm:$0xf]
        %v312 = vld [vmem:[%s213 + $0x15c] sm:$0xff]
        %v313 = vld [vmem:[%s213 + $0x164] sm:$0xf]
        %v314 = vld [vmem:[%s213 + $0x168] sm:$0xff]
        %v315 = vld [vmem:[%s213 + $0x170] sm:$0xf]
        %v316 = vld [vmem:[%s213 + $0x174] sm:$0xff]
        %v317 = vld [vmem:[%s213 + $0x17c] sm:$0xf]
        %v318 = vld [vmem:[%s213 + $0x180] sm:$0xff]
        %v319 = vld [vmem:[%s213 + $0x188] sm:$0xf]
        %v320 = vld [vmem:[%s213 + $0x18c] sm:$0xff]
        %v321 = vld [vmem:[%s213 + $0x194] sm:$0xf]
        %v322 = vld [vmem:[%s213 + $0x198] sm:$0xff]
        %v323 = vld [vmem:[%s213 + $0x1a0] sm:$0xf]
        %v324 = vld [vmem:[%s213 + $0x1a4] sm:$0xff]
        %v325 = vld [vmem:[%s213 + $0x1ac] sm:$0xf]
        %v326 = vld [vmem:[%s213 + $0x1b0] sm:$0xff]
        %v327 = vld [vmem:[%s213 + $0x1b8] sm:$0xf]
        %v328 = vld [vmem:[%s223] sm:$0xf]
        %v329 = vld [vmem:[%s223 + $0x4] sm:$0xf]
        %v330 = vld [vmem:[%s223 + $0x8] sm:$0xf]
        %v331 = vld [vmem:[%s223 + $0xc] sm:$0xf]
        %v332 = vld [vmem:[%s223 + $0x10] sm:$0xf]
        %v333 = vld [vmem:[%s223 + $0x14] sm:$0xf]
        %v334 = vld [vmem:[%s223 + $0x18] sm:$0xf]
        %v335 = vld [vmem:[%s223 + $0x1c] sm:$0xf]
        %v336 = vld [vmem:[%s223 + $0x20] sm:$0xf]
        %v337 = vld [vmem:[%s223 + $0x24] sm:$0xf]
        %v338 = vld [vmem:[%s223 + $0x28] sm:$0xf]
        %v339 = vld [vmem:[%s223 + $0x2c] sm:$0xf]
        %v340 = vld [vmem:[%s223 + $0x30] sm:$0xf]
        %v341 = vld [vmem:[%s223 + $0x34] sm:$0xf]
        %v342 = vld [vmem:[%s223 + $0x38] sm:$0xf]
        %v343 = vld [vmem:[%s223 + $0x3c] sm:$0xf]
        %v344 = vld [vmem:[%s223 + $0x40] sm:$0xf]
        %v345 = vld [vmem:[%s223 + $0x44] sm:$0xf]
        %v346 = vld [vmem:[%s223 + $0x48] sm:$0xf]
        %v347 = vld [vmem:[%s223 + $0x4c] sm:$0xf]
        %v348 = vld [vmem:[%s223 + $0x50] sm:$0xf]
        %v349 = vld [vmem:[%s223 + $0x54] sm:$0xf]
        %v350 = vld [vmem:[%s223 + $0x58] sm:$0xf]
        %v351 = vld [vmem:[%s223 + $0x5c] sm:$0xf]
        %v352 = vld [vmem:[%s223 + $0x60] sm:$0xf]
        %v353 = vld [vmem:[%s223 + $0x64] sm:$0xf]
        %v354 = vld [vmem:[%s223 + $0x68] sm:$0xf]
        %v355 = vld [vmem:[%s223 + $0x6c] sm:$0xf]
        %v356 = vld [vmem:[%s223 + $0x70] sm:$0xf]
        %v357 = vld [vmem:[%s223 + $0x74] sm:$0xf]
        %v358 = vld [vmem:[%s223 + $0x78] sm:$0xf]
        %v359 = vld [vmem:[%s223 + $0x7c] sm:$0xf]
        %v360 = vld [vmem:[%s223 + $0x80] sm:$0xf]
        %v361 = vld [vmem:[%s223 + $0x84] sm:$0xf]
        %v362 = vld [vmem:[%s223 + $0x88] sm:$0xf]
        %v363 = vld [vmem:[%s223 + $0x8c] sm:$0xf]
        %v364 = vld [vmem:[%s223 + $0x90] sm:$0xf]
        %v365 = vld [vmem:[%s223 + $0x94] sm:$0xf]
        %v366 = vld [vmem:[%s223 + $0x98] sm:$0xf]
        %v367 = vld [vmem:[%s223 + $0x9c] sm:$0xf]
        %v368 = vld [vmem:[%s223 + $0xa0] sm:$0xf]
        %v369 = vld [vmem:[%s223 + $0xa4] sm:$0xf]
        %v370 = vld [vmem:[%s223 + $0xa8] sm:$0xf]
        %v371 = vld [vmem:[%s223 + $0xac] sm:$0xf]
        %v372 = vld [vmem:[%s223 + $0xb0] sm:$0xf]
        %v373 = vld [vmem:[%s223 + $0xb4] sm:$0xf]
        %v374 = vld [vmem:[%s223 + $0xb8] sm:$0xf]
        %v375 = vld [vmem:[%s223 + $0xbc] sm:$0xf]
        %v376 = vld [vmem:[%s2] sm:$0x1]
        %v378 = vperm.slane %v376, 0
        %v454 = vunpack.c.l.b16 %v254
        %v455 = vunpack.c.h.b16 %v254
        %v456 = vunpack.c.l.b16 %v255
        %v457 = vunpack.c.l.b16 %v256
        %v458 = vunpack.c.h.b16 %v256
        %v459 = vunpack.c.l.b16 %v257
        %v460 = vunpack.c.l.b16 %v258
        %v461 = vunpack.c.h.b16 %v258
        %v462 = vunpack.c.l.b16 %v259
        %v463 = vunpack.c.l.b16 %v260
        %v464 = vunpack.c.h.b16 %v260
        %v465 = vunpack.c.l.b16 %v261
        %v466 = vunpack.c.l.b16 %v262
        %v467 = vunpack.c.h.b16 %v262
        %v468 = vunpack.c.l.b16 %v263
        %v469 = vunpack.c.l.b16 %v264
        %v470 = vunpack.c.h.b16 %v264
        %v471 = vunpack.c.l.b16 %v265
        %v472 = vunpack.c.l.b16 %v266
        %v473 = vunpack.c.h.b16 %v266
        %v474 = vunpack.c.l.b16 %v267
        %v475 = vunpack.c.l.b16 %v268
        %v476 = vunpack.c.h.b16 %v268
        %v477 = vunpack.c.l.b16 %v269
        %v478 = vunpack.c.l.b16 %v270
        %v479 = vunpack.c.h.b16 %v270
        %v480 = vunpack.c.l.b16 %v271
        %v481 = vunpack.c.l.b16 %v272
        %v482 = vunpack.c.h.b16 %v272
        %v483 = vunpack.c.l.b16 %v273
        %v484 = vunpack.c.l.b16 %v274
        %v485 = vunpack.c.h.b16 %v274
        %v486 = vunpack.c.l.b16 %v275
        %v487 = vunpack.c.l.b16 %v276
        %v488 = vunpack.c.h.b16 %v276
        %v489 = vunpack.c.l.b16 %v277
        %v490 = vunpack.c.l.b16 %v278
        %v491 = vunpack.c.h.b16 %v278
        %v492 = vunpack.c.l.b16 %v279
        %v493 = vunpack.c.l.b16 %v280
        %v494 = vunpack.c.h.b16 %v280
        %v495 = vunpack.c.l.b16 %v281
        %v496 = vunpack.c.l.b16 %v282
        %v497 = vunpack.c.h.b16 %v282
        %v498 = vunpack.c.l.b16 %v283
        %v499 = vunpack.c.l.b16 %v284
        %v500 = vunpack.c.h.b16 %v284
        %v501 = vunpack.c.l.b16 %v285
        %v502 = vunpack.c.l.b16 %v286
        %v503 = vunpack.c.h.b16 %v286
        %v504 = vunpack.c.l.b16 %v287
        %v505 = vunpack.c.l.b16 %v288
        %v506 = vunpack.c.h.b16 %v288
        %v507 = vunpack.c.l.b16 %v289
        %v508 = vunpack.c.l.b16 %v290
        %v509 = vunpack.c.h.b16 %v290
        %v510 = vunpack.c.l.b16 %v291
        %v511 = vunpack.c.l.b16 %v292
        %v512 = vunpack.c.h.b16 %v292
        %v513 = vunpack.c.l.b16 %v293
        %v514 = vunpack.c.l.b16 %v294
        %v515 = vunpack.c.h.b16 %v294
        %v516 = vunpack.c.l.b16 %v295
        %v517 = vunpack.c.l.b16 %v296
        %v518 = vunpack.c.h.b16 %v296
        %v519 = vunpack.c.l.b16 %v297
        %v520 = vunpack.c.l.b16 %v298
        %v521 = vunpack.c.h.b16 %v298
        %v522 = vunpack.c.l.b16 %v299
        %v523 = vunpack.c.l.b16 %v300
        %v524 = vunpack.c.h.b16 %v300
        %v525 = vunpack.c.l.b16 %v301
        %v526 = vunpack.c.l.b16 %v302
        %v527 = vunpack.c.h.b16 %v302
        %v528 = vunpack.c.l.b16 %v303
        %v529 = vunpack.c.l.b16 %v304
        %v530 = vunpack.c.h.b16 %v304
        %v531 = vunpack.c.l.b16 %v305
        %v532 = vunpack.c.l.b16 %v306
        %v533 = vunpack.c.h.b16 %v306
        %v534 = vunpack.c.l.b16 %v307
        %v535 = vunpack.c.l.b16 %v308
        %v536 = vunpack.c.h.b16 %v308
        %v537 = vunpack.c.l.b16 %v309
        %v538 = vunpack.c.l.b16 %v310
        %v539 = vunpack.c.h.b16 %v310
        %v540 = vunpack.c.l.b16 %v311
        %v541 = vunpack.c.l.b16 %v312
        %v542 = vunpack.c.h.b16 %v312
        %v543 = vunpack.c.l.b16 %v313
        %v544 = vunpack.c.l.b16 %v314
        %v545 = vunpack.c.h.b16 %v314
        %v546 = vunpack.c.l.b16 %v315
        %v547 = vunpack.c.l.b16 %v316
        %v548 = vunpack.c.h.b16 %v316
        %v549 = vunpack.c.l.b16 %v317
        %v550 = vunpack.c.l.b16 %v318
        %v551 = vunpack.c.h.b16 %v318
        %v552 = vunpack.c.l.b16 %v319
        %v553 = vunpack.c.l.b16 %v320
        %v554 = vunpack.c.h.b16 %v320
        %v555 = vunpack.c.l.b16 %v321
        %v556 = vunpack.c.l.b16 %v322
        %v557 = vunpack.c.h.b16 %v322
        %v558 = vunpack.c.l.b16 %v323
        %v559 = vunpack.c.l.b16 %v324
        %v560 = vunpack.c.h.b16 %v324
        %v561 = vunpack.c.l.b16 %v325
        %v562 = vunpack.c.l.b16 %v326
        %v563 = vunpack.c.h.b16 %v326
        %v564 = vunpack.c.l.b16 %v327
        %v565 = vpack.c.b16 %v457, %v454
        %v566 = vpack.c.b16 %v458, %v455
        %v567 = vpack.c.b16 %v459, %v456
        %v568 = vpack.c.b16 %v463, %v460
        %v569 = vpack.c.b16 %v464, %v461
        %v570 = vpack.c.b16 %v465, %v462
        %v571 = vpack.c.b16 %v469, %v466
        %v572 = vpack.c.b16 %v470, %v467
        %v573 = vpack.c.b16 %v471, %v468
        %v574 = vpack.c.b16 %v475, %v472
        %v575 = vpack.c.b16 %v476, %v473
        %v576 = vpack.c.b16 %v477, %v474
        %v577 = vpack.c.b16 %v481, %v478
        %v578 = vpack.c.b16 %v482, %v479
        %v579 = vpack.c.b16 %v483, %v480
        %v580 = vpack.c.b16 %v487, %v484
        %v581 = vpack.c.b16 %v488, %v485
        %v582 = vpack.c.b16 %v489, %v486
        %v583 = vpack.c.b16 %v493, %v490
        %v584 = vpack.c.b16 %v494, %v491
        %v585 = vpack.c.b16 %v495, %v492
        %v586 = vpack.c.b16 %v499, %v496
        %v587 = vpack.c.b16 %v500, %v497
        %v588 = vpack.c.b16 %v501, %v498
        %v589 = vpack.c.b16 %v505, %v502
        %v590 = vpack.c.b16 %v506, %v503
        %v591 = vpack.c.b16 %v507, %v504
        %v592 = vpack.c.b16 %v511, %v508
        %v593 = vpack.c.b16 %v512, %v509
        %v594 = vpack.c.b16 %v513, %v510
        %v595 = vpack.c.b16 %v517, %v514
        %v596 = vpack.c.b16 %v518, %v515
        %v597 = vpack.c.b16 %v519, %v516
        %v598 = vpack.c.b16 %v523, %v520
        %v599 = vpack.c.b16 %v524, %v521
        %v600 = vpack.c.b16 %v525, %v522
        %v601 = vpack.c.b16 %v529, %v526
        %v602 = vpack.c.b16 %v530, %v527
        %v603 = vpack.c.b16 %v531, %v528
        %v604 = vpack.c.b16 %v535, %v532
        %v605 = vpack.c.b16 %v536, %v533
        %v606 = vpack.c.b16 %v537, %v534
        %v607 = vpack.c.b16 %v541, %v538
        %v608 = vpack.c.b16 %v542, %v539
        %v609 = vpack.c.b16 %v543, %v540
        %v610 = vpack.c.b16 %v547, %v544
        %v611 = vpack.c.b16 %v548, %v545
        %v612 = vpack.c.b16 %v549, %v546
        %v613 = vpack.c.b16 %v553, %v550
        %v614 = vpack.c.b16 %v554, %v551
        %v615 = vpack.c.b16 %v555, %v552
        %v616 = vpack.c.b16 %v559, %v556
        %v617 = vpack.c.b16 %v560, %v557
        %v618 = vpack.c.b16 %v561, %v558
        %v619 = vpack.c.b16 %v562, %v562
        %v620 = vpack.c.b16 %v563, %v563
        %v621 = vpack.c.b16 %v564, %v564
        %v727 = vunpack.c.l.b16 %v328
        %v728 = vunpack.c.l.b16 %v329
        %v729 = vunpack.c.l.b16 %v330
        %v730 = vunpack.c.l.b16 %v331
        %v731 = vunpack.c.l.b16 %v332
        %v732 = vunpack.c.l.b16 %v333
        %v733 = vunpack.c.l.b16 %v334
        %v734 = vunpack.c.l.b16 %v335
        %v735 = vunpack.c.l.b16 %v336
        %v736 = vunpack.c.l.b16 %v337
        %v737 = vunpack.c.l.b16 %v338
        %v738 = vunpack.c.l.b16 %v339
        %v739 = vunpack.c.l.b16 %v340
        %v740 = vunpack.c.l.b16 %v341
        %v741 = vunpack.c.l.b16 %v342
        %v742 = vunpack.c.l.b16 %v343
        %v743 = vunpack.c.l.b16 %v344
        %v744 = vunpack.c.l.b16 %v345
        %v745 = vunpack.c.l.b16 %v346
        %v746 = vunpack.c.l.b16 %v347
        %v747 = vunpack.c.l.b16 %v348
        %v748 = vunpack.c.l.b16 %v349
        %v749 = vunpack.c.l.b16 %v350
        %v750 = vunpack.c.l.b16 %v351
        %v751 = vunpack.c.l.b16 %v352
        %v752 = vunpack.c.l.b16 %v353
        %v753 = vunpack.c.l.b16 %v354
        %v754 = vunpack.c.l.b16 %v355
        %v755 = vunpack.c.l.b16 %v356
        %v756 = vunpack.c.l.b16 %v357
        %v757 = vunpack.c.l.b16 %v358
        %v758 = vunpack.c.l.b16 %v359
        %v759 = vunpack.c.l.b16 %v360
        %v760 = vunpack.c.l.b16 %v361
        %v761 = vunpack.c.l.b16 %v362
        %v762 = vunpack.c.l.b16 %v363
        %v763 = vunpack.c.l.b16 %v364
        %v764 = vunpack.c.l.b16 %v365
        %v765 = vunpack.c.l.b16 %v366
        %v766 = vunpack.c.l.b16 %v367
        %v767 = vunpack.c.l.b16 %v368
        %v768 = vunpack.c.l.b16 %v369
        %v769 = vunpack.c.l.b16 %v370
        %v770 = vunpack.c.l.b16 %v371
        %v771 = vunpack.c.l.b16 %v372
        %v772 = vunpack.c.l.b16 %v373
        %v773 = vunpack.c.l.b16 %v374
        %v774 = vunpack.c.l.b16 %v375
        %v775 = vpack.c.b16 %v728, %v727
        %v776 = vpack.c.b16 %v730, %v729
        %v777 = vpack.c.b16 %v732, %v731
        %v778 = vpack.c.b16 %v734, %v733
        %v779 = vpack.c.b16 %v736, %v735
        %v780 = vpack.c.b16 %v738, %v737
        %v781 = vpack.c.b16 %v740, %v739
        %v782 = vpack.c.b16 %v742, %v741
        %v783 = vpack.c.b16 %v744, %v743
        %v784 = vpack.c.b16 %v746, %v745
        %v785 = vpack.c.b16 %v748, %v747
        %v786 = vpack.c.b16 %v750, %v749
        %v787 = vpack.c.b16 %v752, %v751
        %v788 = vpack.c.b16 %v754, %v753
        %v789 = vpack.c.b16 %v756, %v755
        %v790 = vpack.c.b16 %v758, %v757
        %v791 = vpack.c.b16 %v760, %v759
        %v792 = vpack.c.b16 %v762, %v761
        %v793 = vpack.c.b16 %v764, %v763
        %v794 = vpack.c.b16 %v766, %v765
        %v795 = vpack.c.b16 %v768, %v767
        %v796 = vpack.c.b16 %v770, %v769
        %v797 = vpack.c.b16 %v772, %v771
        %v798 = vpack.c.b16 %v774, %v773
        %823 = vmatpush.bf16.msra.mxu0 %v782
        %824 = vmatpush.bf16.msra.mxu0 %v781
        %825 = vmatpush.bf16.msra.mxu0 %v780
        %826 = vmatpush.bf16.msra.mxu0 %v779
        %827 = vmatpush.bf16.msra.mxu0 %v778
        %828 = vmatpush.bf16.msra.mxu0 %v777
        %829 = vmatpush.bf16.msra.mxu0 %v776
        %830 = vmatpush.bf16.msra.mxu0 %v775
        %831 = vmatmul.bf16.gmra.mxu0 %v565
        %v832 = vpop.f32.mrf.mxu0
        %v833 = vadd.f32 %v378, %v832
        %v834 = vpop.f32.mrf.mxu0
        %v835 = vadd.f32 %v378, %v834
        %836 = vmatmul.bf16.gmra.mxu0 %v568
        %v837 = vpop.f32.mrf.mxu0
        %v838 = vadd.f32 %v378, %v837
        %v839 = vpop.f32.mrf.mxu0
        %v840 = vadd.f32 %v378, %v839
        %841 = vmatmul.bf16.gmra.mxu0 %v571
        %v842 = vpop.f32.mrf.mxu0
        %v843 = vadd.f32 %v378, %v842
        %v844 = vpop.f32.mrf.mxu0
        %v845 = vadd.f32 %v378, %v844
        %846 = vmatmul.bf16.gmra.mxu0 %v574
        %v847 = vpop.f32.mrf.mxu0
        %v848 = vadd.f32 %v378, %v847
        %v849 = vpop.f32.mrf.mxu0
        %v850 = vadd.f32 %v378, %v849
        %851 = vmatmul.bf16.gmra.mxu0 %v577
        %v852 = vpop.f32.mrf.mxu0
        %v853 = vadd.f32 %v378, %v852
        %v854 = vpop.f32.mrf.mxu0
        %v855 = vadd.f32 %v378, %v854
        %856 = vmatmul.bf16.gmra.mxu0 %v580
        %v857 = vpop.f32.mrf.mxu0
        %v858 = vadd.f32 %v378, %v857
        %v859 = vpop.f32.mrf.mxu0
        %v860 = vadd.f32 %v378, %v859
        %861 = vmatmul.bf16.gmra.mxu0 %v583
        %v862 = vpop.f32.mrf.mxu0
        %v863 = vadd.f32 %v378, %v862
        %v864 = vpop.f32.mrf.mxu0
        %v865 = vadd.f32 %v378, %v864
        %866 = vmatmul.bf16.gmra.mxu0 %v586
        %v867 = vpop.f32.mrf.mxu0
        %v868 = vadd.f32 %v378, %v867
        %v869 = vpop.f32.mrf.mxu0
        %v870 = vadd.f32 %v378, %v869
        %871 = vmatmul.bf16.gmra.mxu0 %v589
        %v872 = vpop.f32.mrf.mxu0
        %v873 = vadd.f32 %v378, %v872
        %v874 = vpop.f32.mrf.mxu0
        %v875 = vadd.f32 %v378, %v874
        %876 = vmatmul.bf16.gmra.mxu0 %v592
        %v877 = vpop.f32.mrf.mxu0
        %v878 = vadd.f32 %v378, %v877
        %v879 = vpop.f32.mrf.mxu0
        %v880 = vadd.f32 %v378, %v879
        %881 = vmatmul.bf16.gmra.mxu0 %v595
        %v882 = vpop.f32.mrf.mxu0
        %v883 = vadd.f32 %v378, %v882
        %v884 = vpop.f32.mrf.mxu0
        %v885 = vadd.f32 %v378, %v884
        %886 = vmatmul.bf16.gmra.mxu0 %v598
        %v887 = vpop.f32.mrf.mxu0
        %v888 = vadd.f32 %v378, %v887
        %v889 = vpop.f32.mrf.mxu0
        %v890 = vadd.f32 %v378, %v889
        %891 = vmatmul.bf16.gmra.mxu0 %v601
        %v892 = vpop.f32.mrf.mxu0
        %v893 = vadd.f32 %v378, %v892
        %v894 = vpop.f32.mrf.mxu0
        %v895 = vadd.f32 %v378, %v894
        %896 = vmatmul.bf16.gmra.mxu0 %v604
        %v897 = vpop.f32.mrf.mxu0
        %v898 = vadd.f32 %v378, %v897
        %v899 = vpop.f32.mrf.mxu0
        %v900 = vadd.f32 %v378, %v899
        %901 = vmatmul.bf16.gmra.mxu0 %v607
        %v902 = vpop.f32.mrf.mxu0
        %v903 = vadd.f32 %v378, %v902
        %v904 = vpop.f32.mrf.mxu0
        %v905 = vadd.f32 %v378, %v904
        %906 = vmatmul.bf16.gmra.mxu0 %v610
        %v907 = vpop.f32.mrf.mxu0
        %v908 = vadd.f32 %v378, %v907
        %v909 = vpop.f32.mrf.mxu0
        %v910 = vadd.f32 %v378, %v909
        %911 = vmatmul.bf16.gmra.mxu0 %v613
        %v912 = vpop.f32.mrf.mxu0
        %v913 = vadd.f32 %v378, %v912
        %v914 = vpop.f32.mrf.mxu0
        %v915 = vadd.f32 %v378, %v914
        %916 = vmatmul.bf16.gmra.mxu0 %v616
        %v917 = vpop.f32.mrf.mxu0
        %v918 = vadd.f32 %v378, %v917
        %v919 = vpop.f32.mrf.mxu0
        %v920 = vadd.f32 %v378, %v919
        %921 = vmatmul.bf16.gmra.mxu0 %v619
        %v922 = vpop.f32.mrf.mxu0
        %v923 = vadd.f32 %v378, %v922
        %v924 = vpop.f32.mrf.mxu0
        %925 = vdwg.mxu0
        %926 = vmatpush.bf16.msra.mxu0 %v790
        %927 = vmatpush.bf16.msra.mxu0 %v789
        %928 = vmatpush.bf16.msra.mxu0 %v788
        %929 = vmatpush.bf16.msra.mxu0 %v787
        %930 = vmatpush.bf16.msra.mxu0 %v786
        %931 = vmatpush.bf16.msra.mxu0 %v785
        %932 = vmatpush.bf16.msra.mxu0 %v784
        %933 = vmatpush.bf16.msra.mxu0 %v783
        %934 = vmatmul.bf16.gmra.mxu0 %v566
        %v935 = vpop.f32.mrf.mxu0
        %v936 = vadd.f32 %v833, %v935
        %v937 = vpop.f32.mrf.mxu0
        %v938 = vadd.f32 %v835, %v937
        %939 = vmatmul.bf16.gmra.mxu0 %v569
        %v940 = vpop.f32.mrf.mxu0
        %v941 = vadd.f32 %v838, %v940
        %v942 = vpop.f32.mrf.mxu0
        %v943 = vadd.f32 %v840, %v942
        %944 = vmatmul.bf16.gmra.mxu0 %v572
        %v945 = vpop.f32.mrf.mxu0
        %v946 = vadd.f32 %v843, %v945
        %v947 = vpop.f32.mrf.mxu0
        %v948 = vadd.f32 %v845, %v947
        %949 = vmatmul.bf16.gmra.mxu0 %v575
        %v950 = vpop.f32.mrf.mxu0
        %v951 = vadd.f32 %v848, %v950
        %v952 = vpop.f32.mrf.mxu0
        %v953 = vadd.f32 %v850, %v952
        %954 = vmatmul.bf16.gmra.mxu0 %v578
        %v955 = vpop.f32.mrf.mxu0
        %v956 = vadd.f32 %v853, %v955
        %v957 = vpop.f32.mrf.mxu0
        %v958 = vadd.f32 %v855, %v957
        %959 = vmatmul.bf16.gmra.mxu0 %v581
        %v960 = vpop.f32.mrf.mxu0
        %v961 = vadd.f32 %v858, %v960
        %v962 = vpop.f32.mrf.mxu0
        %v963 = vadd.f32 %v860, %v962
        %964 = vmatmul.bf16.gmra.mxu0 %v584
        %v965 = vpop.f32.mrf.mxu0
        %v966 = vadd.f32 %v863, %v965
        %v967 = vpop.f32.mrf.mxu0
        %v968 = vadd.f32 %v865, %v967
        %969 = vmatmul.bf16.gmra.mxu0 %v587
        %v970 = vpop.f32.mrf.mxu0
        %v971 = vadd.f32 %v868, %v970
        %v972 = vpop.f32.mrf.mxu0
        %v973 = vadd.f32 %v870, %v972
        %974 = vmatmul.bf16.gmra.mxu0 %v590
        %v975 = vpop.f32.mrf.mxu0
        %v976 = vadd.f32 %v873, %v975
        %v977 = vpop.f32.mrf.mxu0
        %v978 = vadd.f32 %v875, %v977
        %979 = vmatmul.bf16.gmra.mxu0 %v593
        %v980 = vpop.f32.mrf.mxu0
        %v981 = vadd.f32 %v878, %v980
        %v982 = vpop.f32.mrf.mxu0
        %v983 = vadd.f32 %v880, %v982
        %984 = vmatmul.bf16.gmra.mxu0 %v596
        %v985 = vpop.f32.mrf.mxu0
        %v986 = vadd.f32 %v883, %v985
        %v987 = vpop.f32.mrf.mxu0
        %v988 = vadd.f32 %v885, %v987
        %989 = vmatmul.bf16.gmra.mxu0 %v599
        %v990 = vpop.f32.mrf.mxu0
        %v991 = vadd.f32 %v888, %v990
        %v992 = vpop.f32.mrf.mxu0
        %v993 = vadd.f32 %v890, %v992
        %994 = vmatmul.bf16.gmra.mxu0 %v602
        %v995 = vpop.f32.mrf.mxu0
        %v996 = vadd.f32 %v893, %v995
        %v997 = vpop.f32.mrf.mxu0
        %v998 = vadd.f32 %v895, %v997
        %999 = vmatmul.bf16.gmra.mxu0 %v605
        %v1000 = vpop.f32.mrf.mxu0
        %v1001 = vadd.f32 %v898, %v1000
        %v1002 = vpop.f32.mrf.mxu0
        %v1003 = vadd.f32 %v900, %v1002
        %1004 = vmatmul.bf16.gmra.mxu0 %v608
        %v1005 = vpop.f32.mrf.mxu0
        %v1006 = vadd.f32 %v903, %v1005
        %v1007 = vpop.f32.mrf.mxu0
        %v1008 = vadd.f32 %v905, %v1007
        %1009 = vmatmul.bf16.gmra.mxu0 %v611
        %v1010 = vpop.f32.mrf.mxu0
        %v1011 = vadd.f32 %v908, %v1010
        %v1012 = vpop.f32.mrf.mxu0
        %v1013 = vadd.f32 %v910, %v1012
        %1014 = vmatmul.bf16.gmra.mxu0 %v614
        %v1015 = vpop.f32.mrf.mxu0
        %v1016 = vadd.f32 %v913, %v1015
        %v1017 = vpop.f32.mrf.mxu0
        %v1018 = vadd.f32 %v915, %v1017
        %1019 = vmatmul.bf16.gmra.mxu0 %v617
        %v1020 = vpop.f32.mrf.mxu0
        %v1021 = vadd.f32 %v918, %v1020
        %v1022 = vpop.f32.mrf.mxu0
        %v1023 = vadd.f32 %v920, %v1022
        %1024 = vmatmul.bf16.gmra.mxu0 %v620
        %v1025 = vpop.f32.mrf.mxu0
        %v1026 = vadd.f32 %v923, %v1025
        %v1027 = vpop.f32.mrf.mxu0
        %1028 = vdwg.mxu0
        %1029 = vmatpush.bf16.msra.mxu0 %v798
        %1030 = vmatpush.bf16.msra.mxu0 %v797
        %1031 = vmatpush.bf16.msra.mxu0 %v796
        %1032 = vmatpush.bf16.msra.mxu0 %v795
        %1033 = vmatpush.bf16.msra.mxu0 %v794
        %1034 = vmatpush.bf16.msra.mxu0 %v793
        %1035 = vmatpush.bf16.msra.mxu0 %v792
        %1036 = vmatpush.bf16.msra.mxu0 %v791
        %1037 = vmatmul.bf16.gmra.mxu0 %v567
        %v1038 = vpop.f32.mrf.mxu0
        %v1039 = vadd.f32 %v936, %v1038
        %v1040 = vpop.f32.mrf.mxu0
        %v1041 = vadd.f32 %v938, %v1040
        %1042 = vmatmul.bf16.gmra.mxu0 %v570
        %v1043 = vpop.f32.mrf.mxu0
        %v1044 = vadd.f32 %v941, %v1043
        %v1045 = vpop.f32.mrf.mxu0
        %v1046 = vadd.f32 %v943, %v1045
        %1047 = vmatmul.bf16.gmra.mxu0 %v573
        %v1048 = vpop.f32.mrf.mxu0
        %v1049 = vadd.f32 %v946, %v1048
        %v1050 = vpop.f32.mrf.mxu0
        %v1051 = vadd.f32 %v948, %v1050
        %1052 = vmatmul.bf16.gmra.mxu0 %v576
        %v1053 = vpop.f32.mrf.mxu0
        %v1054 = vadd.f32 %v951, %v1053
        %v1055 = vpop.f32.mrf.mxu0
        %v1056 = vadd.f32 %v953, %v1055
        %1057 = vmatmul.bf16.gmra.mxu0 %v579
        %v1058 = vpop.f32.mrf.mxu0
        %v1059 = vadd.f32 %v956, %v1058
        %v1060 = vpop.f32.mrf.mxu0
        %v1061 = vadd.f32 %v958, %v1060
        %1062 = vmatmul.bf16.gmra.mxu0 %v582
        %v1063 = vpop.f32.mrf.mxu0
        %v1064 = vadd.f32 %v961, %v1063
        %v1065 = vpop.f32.mrf.mxu0
        %v1066 = vadd.f32 %v963, %v1065
        %1067 = vmatmul.bf16.gmra.mxu0 %v585
        %v1068 = vpop.f32.mrf.mxu0
        %v1069 = vadd.f32 %v966, %v1068
        %v1070 = vpop.f32.mrf.mxu0
        %v1071 = vadd.f32 %v968, %v1070
        %1072 = vmatmul.bf16.gmra.mxu0 %v588
        %v1073 = vpop.f32.mrf.mxu0
        %v1074 = vadd.f32 %v971, %v1073
        %v1075 = vpop.f32.mrf.mxu0
        %v1076 = vadd.f32 %v973, %v1075
        %1077 = vmatmul.bf16.gmra.mxu0 %v591
        %v1078 = vpop.f32.mrf.mxu0
        %v1079 = vadd.f32 %v976, %v1078
        %v1080 = vpop.f32.mrf.mxu0
        %v1081 = vadd.f32 %v978, %v1080
        %1082 = vmatmul.bf16.gmra.mxu0 %v594
        %v1083 = vpop.f32.mrf.mxu0
        %v1084 = vadd.f32 %v981, %v1083
        %v1085 = vpop.f32.mrf.mxu0
        %v1086 = vadd.f32 %v983, %v1085
        %1087 = vmatmul.bf16.gmra.mxu0 %v597
        %v1088 = vpop.f32.mrf.mxu0
        %v1089 = vadd.f32 %v986, %v1088
        %v1090 = vpop.f32.mrf.mxu0
        %v1091 = vadd.f32 %v988, %v1090
        %1092 = vmatmul.bf16.gmra.mxu0 %v600
        %v1093 = vpop.f32.mrf.mxu0
        %v1094 = vadd.f32 %v991, %v1093
        %v1095 = vpop.f32.mrf.mxu0
        %v1096 = vadd.f32 %v993, %v1095
        %1097 = vmatmul.bf16.gmra.mxu0 %v603
        %v1098 = vpop.f32.mrf.mxu0
        %v1099 = vadd.f32 %v996, %v1098
        %v1100 = vpop.f32.mrf.mxu0
        %v1101 = vadd.f32 %v998, %v1100
        %1102 = vmatmul.bf16.gmra.mxu0 %v606
        %v1103 = vpop.f32.mrf.mxu0
        %v1104 = vadd.f32 %v1001, %v1103
        %v1105 = vpop.f32.mrf.mxu0
        %v1106 = vadd.f32 %v1003, %v1105
        %1107 = vmatmul.bf16.gmra.mxu0 %v609
        %v1108 = vpop.f32.mrf.mxu0
        %v1109 = vadd.f32 %v1006, %v1108
        %v1110 = vpop.f32.mrf.mxu0
        %v1111 = vadd.f32 %v1008, %v1110
        %1112 = vmatmul.bf16.gmra.mxu0 %v612
        %v1113 = vpop.f32.mrf.mxu0
        %v1114 = vadd.f32 %v1011, %v1113
        %v1115 = vpop.f32.mrf.mxu0
        %v1116 = vadd.f32 %v1013, %v1115
        %1117 = vmatmul.bf16.gmra.mxu0 %v615
        %v1118 = vpop.f32.mrf.mxu0
        %v1119 = vadd.f32 %v1016, %v1118
        %v1120 = vpop.f32.mrf.mxu0
        %v1121 = vadd.f32 %v1018, %v1120
        %1122 = vmatmul.bf16.gmra.mxu0 %v618
        %v1123 = vpop.f32.mrf.mxu0
        %v1124 = vadd.f32 %v1021, %v1123
        %v1125 = vpop.f32.mrf.mxu0
        %v1126 = vadd.f32 %v1023, %v1125
        %1127 = vmatmul.bf16.gmra.mxu0 %v621
        %v1128 = vpop.f32.mrf.mxu0
        %v1129 = vadd.f32 %v1026, %v1128
        %v1130 = vpop.f32.mrf.mxu0
        %1131 = vdwg.mxu0
        %v1132 = vadd.f32 %v1039, 3.0
        %v1133 = vadd.f32 %v1041, 3.0
        %v1134 = vadd.f32 %v1044, 3.0
        %v1135 = vadd.f32 %v1046, 3.0
        %v1136 = vadd.f32 %v1049, 3.0
        %v1137 = vadd.f32 %v1051, 3.0
        %v1138 = vadd.f32 %v1054, 3.0
        %v1139 = vadd.f32 %v1056, 3.0
        %v1140 = vadd.f32 %v1059, 3.0
        %v1141 = vadd.f32 %v1061, 3.0
        %v1142 = vadd.f32 %v1064, 3.0
        %v1143 = vadd.f32 %v1066, 3.0
        %v1144 = vadd.f32 %v1069, 3.0
        %v1145 = vadd.f32 %v1071, 3.0
        %v1146 = vadd.f32 %v1074, 3.0
        %v1147 = vadd.f32 %v1076, 3.0
        %v1148 = vadd.f32 %v1079, 3.0
        %v1149 = vadd.f32 %v1081, 3.0
        %v1150 = vadd.f32 %v1084, 3.0
        %v1151 = vadd.f32 %v1086, 3.0
        %v1152 = vadd.f32 %v1089, 3.0
        %v1153 = vadd.f32 %v1091, 3.0
        %v1154 = vadd.f32 %v1094, 3.0
        %v1155 = vadd.f32 %v1096, 3.0
        %v1156 = vadd.f32 %v1099, 3.0
        %v1157 = vadd.f32 %v1101, 3.0
        %v1158 = vadd.f32 %v1104, 3.0
        %v1159 = vadd.f32 %v1106, 3.0
        %v1160 = vadd.f32 %v1109, 3.0
        %v1161 = vadd.f32 %v1111, 3.0
        %v1162 = vadd.f32 %v1114, 3.0
        %v1163 = vadd.f32 %v1116, 3.0
        %v1164 = vadd.f32 %v1119, 3.0
        %v1165 = vadd.f32 %v1121, 3.0
        %v1166 = vadd.f32 %v1124, 3.0
        %v1167 = vadd.f32 %v1126, 3.0
        %v1168 = vadd.f32 %v1129, 3.0
        %v1169 = vmax.f32 %v1132, 0.0
        %v1170 = vmax.f32 %v1133, 0.0
        %v1171 = vmax.f32 %v1134, 0.0
        %v1172 = vmax.f32 %v1135, 0.0
        %v1173 = vmax.f32 %v1136, 0.0
        %v1174 = vmax.f32 %v1137, 0.0
        %v1175 = vmax.f32 %v1138, 0.0
        %v1176 = vmax.f32 %v1139, 0.0
        %v1177 = vmax.f32 %v1140, 0.0
        %v1178 = vmax.f32 %v1141, 0.0
        %v1179 = vmax.f32 %v1142, 0.0
        %v1180 = vmax.f32 %v1143, 0.0
        %v1181 = vmax.f32 %v1144, 0.0
        %v1182 = vmax.f32 %v1145, 0.0
        %v1183 = vmax.f32 %v1146, 0.0
        %v1184 = vmax.f32 %v1147, 0.0
        %v1185 = vmax.f32 %v1148, 0.0
        %v1186 = vmax.f32 %v1149, 0.0
        %v1187 = vmax.f32 %v1150, 0.0
        %v1188 = vmax.f32 %v1151, 0.0
        %v1189 = vmax.f32 %v1152, 0.0
        %v1190 = vmax.f32 %v1153, 0.0
        %v1191 = vmax.f32 %v1154, 0.0
        %v1192 = vmax.f32 %v1155, 0.0
        %v1193 = vmax.f32 %v1156, 0.0
        %v1194 = vmax.f32 %v1157, 0.0
        %v1195 = vmax.f32 %v1158, 0.0
        %v1196 = vmax.f32 %v1159, 0.0
        %v1197 = vmax.f32 %v1160, 0.0
        %v1198 = vmax.f32 %v1161, 0.0
        %v1199 = vmax.f32 %v1162, 0.0
        %v1200 = vmax.f32 %v1163, 0.0
        %v1201 = vmax.f32 %v1164, 0.0
        %v1202 = vmax.f32 %v1165, 0.0
        %v1203 = vmax.f32 %v1166, 0.0
        %v1204 = vmax.f32 %v1167, 0.0
        %v1205 = vmax.f32 %v1168, 0.0
        %v1206 = vmin.f32 %v1169, 6.0
        %v1207 = vmin.f32 %v1170, 6.0
        %v1208 = vmin.f32 %v1171, 6.0
        %v1209 = vmin.f32 %v1172, 6.0
        %v1210 = vmin.f32 %v1173, 6.0
        %v1211 = vmin.f32 %v1174, 6.0
        %v1212 = vmin.f32 %v1175, 6.0
        %v1213 = vmin.f32 %v1176, 6.0
        %v1214 = vmin.f32 %v1177, 6.0
        %v1215 = vmin.f32 %v1178, 6.0
        %v1216 = vmin.f32 %v1179, 6.0
        %v1217 = vmin.f32 %v1180, 6.0
        %v1218 = vmin.f32 %v1181, 6.0
        %v1219 = vmin.f32 %v1182, 6.0
        %v1220 = vmin.f32 %v1183, 6.0
        %v1221 = vmin.f32 %v1184, 6.0
        %v1222 = vmin.f32 %v1185, 6.0
        %v1223 = vmin.f32 %v1186, 6.0
        %v1224 = vmin.f32 %v1187, 6.0
        %v1225 = vmin.f32 %v1188, 6.0
        %v1226 = vmin.f32 %v1189, 6.0
        %v1227 = vmin.f32 %v1190, 6.0
        %v1228 = vmin.f32 %v1191, 6.0
        %v1229 = vmin.f32 %v1192, 6.0
        %v1230 = vmin.f32 %v1193, 6.0
        %v1231 = vmin.f32 %v1194, 6.0
        %v1232 = vmin.f32 %v1195, 6.0
        %v1233 = vmin.f32 %v1196, 6.0
        %v1234 = vmin.f32 %v1197, 6.0
        %v1235 = vmin.f32 %v1198, 6.0
        %v1236 = vmin.f32 %v1199, 6.0
        %v1237 = vmin.f32 %v1200, 6.0
        %v1238 = vmin.f32 %v1201, 6.0
        %v1239 = vmin.f32 %v1202, 6.0
        %v1240 = vmin.f32 %v1203, 6.0
        %v1241 = vmin.f32 %v1204, 6.0
        %v1242 = vmin.f32 %v1205, 6.0
        %v1243 = vmul.f32 %v1206, 0.16666667
        %v1244 = vmul.f32 %v1207, 0.16666667
        %v1245 = vmul.f32 %v1208, 0.16666667
        %v1246 = vmul.f32 %v1209, 0.16666667
        %v1247 = vmul.f32 %v1210, 0.16666667
        %v1248 = vmul.f32 %v1211, 0.16666667
        %v1249 = vmul.f32 %v1212, 0.16666667
        %v1250 = vmul.f32 %v1213, 0.16666667
        %v1251 = vmul.f32 %v1214, 0.16666667
        %v1252 = vmul.f32 %v1215, 0.16666667
        %v1253 = vmul.f32 %v1216, 0.16666667
        %v1254 = vmul.f32 %v1217, 0.16666667
        %v1255 = vmul.f32 %v1218, 0.16666667
        %v1256 = vmul.f32 %v1219, 0.16666667
        %v1257 = vmul.f32 %v1220, 0.16666667
        %v1258 = vmul.f32 %v1221, 0.16666667
        %v1259 = vmul.f32 %v1222, 0.16666667
        %v1260 = vmul.f32 %v1223, 0.16666667
        %v1261 = vmul.f32 %v1224, 0.16666667
        %v1262 = vmul.f32 %v1225, 0.16666667
        %v1263 = vmul.f32 %v1226, 0.16666667
        %v1264 = vmul.f32 %v1227, 0.16666667
        %v1265 = vmul.f32 %v1228, 0.16666667
        %v1266 = vmul.f32 %v1229, 0.16666667
        %v1267 = vmul.f32 %v1230, 0.16666667
        %v1268 = vmul.f32 %v1231, 0.16666667
        %v1269 = vmul.f32 %v1232, 0.16666667
        %v1270 = vmul.f32 %v1233, 0.16666667
        %v1271 = vmul.f32 %v1234, 0.16666667
        %v1272 = vmul.f32 %v1235, 0.16666667
        %v1273 = vmul.f32 %v1236, 0.16666667
        %v1274 = vmul.f32 %v1237, 0.16666667
        %v1275 = vmul.f32 %v1238, 0.16666667
        %v1276 = vmul.f32 %v1239, 0.16666667
        %v1277 = vmul.f32 %v1240, 0.16666667
        %v1278 = vmul.f32 %v1241, 0.16666667
        %v1279 = vmul.f32 %v1242, 0.16666667
        %1280 = vst [vmem:[%s251] sm:$0xff] %v1243
        %1281 = vst [vmem:[%s251 + $0x8] sm:$0xff] %v1244
        %1282 = vst [vmem:[%s251 + $0x10] sm:$0xff] %v1245
        %1283 = vst [vmem:[%s251 + $0x18] sm:$0xff] %v1246
        %1284 = vst [vmem:[%s251 + $0x20] sm:$0xff] %v1247
        %1285 = vst [vmem:[%s251 + $0x28] sm:$0xff] %v1248
        %1286 = vst [vmem:[%s251 + $0x30] sm:$0xff] %v1249
        %1287 = vst [vmem:[%s251 + $0x38] sm:$0xff] %v1250
        %1288 = vst [vmem:[%s251 + $0x40] sm:$0xff] %v1251
        %1289 = vst [vmem:[%s251 + $0x48] sm:$0xff] %v1252
        %1290 = vst [vmem:[%s251 + $0x50] sm:$0xff] %v1253
        %1291 = vst [vmem:[%s251 + $0x58] sm:$0xff] %v1254
        %1292 = vst [vmem:[%s251 + $0x60] sm:$0xff] %v1255
        %1293 = vst [vmem:[%s251 + $0x68] sm:$0xff] %v1256
        %1294 = vst [vmem:[%s251 + $0x70] sm:$0xff] %v1257
        %1295 = vst [vmem:[%s251 + $0x78] sm:$0xff] %v1258
        %1296 = vst [vmem:[%s251 + $0x80] sm:$0xff] %v1259
        %1297 = vst [vmem:[%s251 + $0x88] sm:$0xff] %v1260
        %1298 = vst [vmem:[%s251 + $0x90] sm:$0xff] %v1261
        %1299 = vst [vmem:[%s251 + $0x98] sm:$0xff] %v1262
        %1300 = vst [vmem:[%s251 + $0xa0] sm:$0xff] %v1263
        %1301 = vst [vmem:[%s251 + $0xa8] sm:$0xff] %v1264
        %1302 = vst [vmem:[%s251 + $0xb0] sm:$0xff] %v1265
        %1303 = vst [vmem:[%s251 + $0xb8] sm:$0xff] %v1266
        %1304 = vst [vmem:[%s251 + $0xc0] sm:$0xff] %v1267
        %1305 = vst [vmem:[%s251 + $0xc8] sm:$0xff] %v1268
        %1306 = vst [vmem:[%s251 + $0xd0] sm:$0xff] %v1269
        %1307 = vst [vmem:[%s251 + $0xd8] sm:$0xff] %v1270
        %1308 = vst [vmem:[%s251 + $0xe0] sm:$0xff] %v1271
        %1309 = vst [vmem:[%s251 + $0xe8] sm:$0xff] %v1272
        %1310 = vst [vmem:[%s251 + $0xf0] sm:$0xff] %v1273
        %1311 = vst [vmem:[%s251 + $0xf8] sm:$0xff] %v1274
        %1312 = vst [vmem:[%s251 + $0x100] sm:$0xff] %v1275
        %1313 = vst [vmem:[%s251 + $0x108] sm:$0xff] %v1276
        %1314 = vst [vmem:[%s251 + $0x110] sm:$0xff] %v1277
        %1315 = vst [vmem:[%s251 + $0x118] sm:$0xff] %v1278
        %1316 = vst [vmem:[%s251 + $0x120] sm:$0xff] %v1279
        %s1317 = sand.u32 %s120, 1
        %s1318 = scalar_lea.sflag [#allocation4], %s1317
        %s1319 = sand.u32 %s120, 1
        %s1320 = smul.addr %s1319, 296
        %s1321 = scalar_lea.vmem [#allocation7], %s1320
        // Predicated region
        $region41: #{tpu_custom_call.1} parent=31 // pred_check
          %p1322 = pneg %p130
        $region42: #{tpu_custom_call.1} parent=31 // pred_check_branch
          %1324 = sbr.rel (%p1322) target = $region44
        $region43: #{tpu_custom_call.1} parent=31 // pred_region
          %s1325 = smul.u32 37, %s28
          %1327 = vsyncadd %s1318, 0
          %s1328 = smul.addr %s27, 37
          %s1329 = sadd.s32 %s1325, %s1328
          %s1330 = smul.addr %s1329, 8
          %s1331 = scalar_lea.hbm %s3, %s1330
          %s1332 = sshll.u32 %s1321, 4
          %s1333 = int_to_ptr.vmem [resolvable:$true] %s1332
          %s1334 = sshll.u32 %s1331, 4
          %s1335 = int_to_ptr.hbm [resolvable:$true] %s1334
          %1340 = dma.vmem_to_hbm [thread:$0]  %s1333, 4736, %s1335, %s1318, 128, 128, 8
        $region44: #{tpu_custom_call.1} parent=31 // pred_fallthru
          _
      $region32: #{tpu_custom_call.1} parent=5 // pred_fallthru
        _
      %p1341 = scmp.le.s32.totalorder 2, %s18
      // Predicated region
      $region45: #{tpu_custom_call.1} parent=5 // pred_check
        %p1342 = pneg %p1341
      $region46: #{tpu_custom_call.1} parent=5 // pred_check_branch
        %1344 = sbr.rel (%p1342) target = $region48
      $region47: #{tpu_custom_call.1} parent=5 // pred_region
        %s1345 = ssub.s32 %s18, 2
        // Predicated region
        $region49: #{tpu_custom_call.1} parent=47 // pred_check
          %p1346 = pneg %p136
        $region50: #{tpu_custom_call.1} parent=47 // pred_check_branch
          %1348 = sbr.rel (%p1346) target = $region52
        $region51: #{tpu_custom_call.1} parent=47 // pred_region
          %s1349 = sand.u32 %s121, 1
          %s1350 = scalar_lea.sflag [#allocation4], %s1349
          %s1351 = sand.u32 %s121, 1
          %s1352 = smul.addr %s1351, 296
          %s1353 = scalar_lea.vmem [#allocation7], %s1352
          %1355 = dma.done %s1350, 4736
        $region52: #{tpu_custom_call.1} parent=47 // pred_fallthru
          _
      $region48: #{tpu_custom_call.1} parent=5 // pred_fallthru
        _
    $region6: #{tpu_custom_call.1} parent=1 // loop_footer
      %s22 = sadd.s32 1, %s18
    $region7: #{tpu_custom_call.1} parent=1 // loop_footer_branch
      %17 = sbr.rel target = $region3
    $region8: #{tpu_custom_call.1} parent=1 // loop_exit
      _
    %1356 = vsyncpa [#allocation3], 1
    %s1357 = scalar_lea.sflag [#allocation3], 1
    %1358 = vsyncpa %s1357, 1
    %1359 = vsyncpa [#allocation6], 1
    %s1360 = scalar_lea.sflag [#allocation6], 1
    %1361 = vsyncpa %s1360, 1
    %1362 = vsyncpa [#allocation4], 1
    %s1363 = scalar_lea.sflag [#allocation4], 1
    %1364 = vsyncpa %s1363, 1

</llo_original>
